<compile_context>
chip_gen: v7x
topology: tpu7x:2x2x1
jax: 0.10.0
libtpu: 0.0.40
codegen_flags: <defaults>
</compile_context>

<pallas_src>
import jax
import jax.numpy as jnp
from jax.experimental import pallas as pl
from jax.experimental.pallas import tpu as pltpu


def _round_up(x, m):
    return (x + m - 1) // m * m


# ---------------------------------------------------------------------------
# Kernel: 5 matmuls fused into 4 MXU calls + f32 elementwise epilogues
# ---------------------------------------------------------------------------
def _mlp_kernel(x_ref, wx_ref, bx_ref, w_ref, b_ref, out_ref):
    # x_ref : (TM, IN_LEN)           f32
    # wx_ref: (IN_LEN, 2*OUT_PAD)    bf16  == [w1a | w_skip]
    # bx_ref: (1, 2*OUT_PAD)         f32   == [b1a | b_skip]
    # w_ref : (3, OUT_PAD, OUT_PAD)  bf16  == [w1b, w2a, w2b]
    # b_ref : (3, 1, OUT_PAD)        f32   == [b1b, b2a, b2b]
    # out_ref:(TM, OUT_LEN)          f32
    out_pad = w_ref.shape[-1]
    out_len = out_ref.shape[-1]
    cdt = wx_ref.dtype  # MXU operand dtype (bf16)

    x = x_ref[...].astype(cdt)

    # Fused first stage: one 2*OUT_PAD-wide matmul feeds both branches.
    hs = jnp.dot(x, wx_ref[...], preferred_element_type=jnp.float32) + bx_ref[...]
    h = jnp.maximum(hs[:, :out_pad], 0.0)   # ReLU(linear1[0](x))
    s = hs[:, out_pad:]                     # skip(x)

    # linear1[2]
    h = jnp.dot(h.astype(cdt), w_ref[0], preferred_element_type=jnp.float32) + b_ref[0]
    # act(linear1(x) + skip(x))
    z = jnp.maximum(h + s, 0.0)
    # linear2[0] -> ReLU
    z = jnp.dot(z.astype(cdt), w_ref[1], preferred_element_type=jnp.float32) + b_ref[1]
    z = jnp.maximum(z, 0.0)
    # linear2[2]
    z = jnp.dot(z.astype(cdt), w_ref[2], preferred_element_type=jnp.float32) + b_ref[2]

    out_ref[...] = z[:, :out_len].astype(out_ref.dtype)


# ---------------------------------------------------------------------------
# Row tiling: ~512-row tiles, even #steps on non-trivial batches (v7x 2 TCs)
# ---------------------------------------------------------------------------
def _pick_row_tiling(m_rows, target=512):
    n_tiles = max(1, pl.cdiv(m_rows, target))
    if m_rows >= 128:
        n_tiles = max(n_tiles, 2)
        if n_tiles % 2:
            n_tiles += 1
    tm = _round_up(pl.cdiv(m_rows, n_tiles), 8)
    n_tiles = pl.cdiv(m_rows, tm)
    return tm, n_tiles


# ---------------------------------------------------------------------------
# Wrapper
# ---------------------------------------------------------------------------
def mlp_forward(x, params, out_dtype=jnp.float32):
    """x: (..., input_len) f32.  Returns (..., output_len) out_dtype."""
    *lead, in_len = x.shape
    assert in_len == params["input_len"]
    out_len = params["output_len"]

    m_rows = 1
    for d in lead:
        m_rows *= d
    x2 = x.reshape(m_rows, in_len)

    tm, n_tiles = _pick_row_tiling(m_rows)

    # VMEM budget: resident weights + double-buffered x/out tiles, 4x headroom,
    # capped at 32 MiB (safe for v7x's 64 MiB physical VMEM).
    weight_bytes = (
        params["wx"].size * params["wx"].dtype.itemsize
        + params["bx"].size * 4
        + params["w"].size * params["w"].dtype.itemsize
        + params["b"].size * 4
    )
    tile_bytes = 2 * (
        tm * in_len * x.dtype.itemsize + tm * out_len * jnp.dtype(out_dtype).itemsize
    )
    vmem_limit = int(min(32 << 20, max(4 * (weight_bytes + tile_bytes), 8 << 20)))

    out = pl.pallas_call(
        _mlp_kernel,
        out_shape=jax.ShapeDtypeStruct((m_rows, out_len), out_dtype),
        grid_spec=pltpu.PrefetchScalarGridSpec(
            num_scalar_prefetch=0,
            grid=(n_tiles,),
            in_specs=[
                pl.BlockSpec((tm, in_len), lambda i: (i, 0)),       # x tile (f32)
                pl.BlockSpec(params["wx"].shape, lambda i: (0, 0)),          # wx (resident)
                pl.BlockSpec(params["bx"].shape, lambda i: (0, 0)),          # bx (resident)
                pl.BlockSpec(params["w"].shape, lambda i: (0, 0, 0)),        # w stack
                pl.BlockSpec(params["b"].shape, lambda i: (0, 0, 0)),        # b stack
            ],
            out_specs=pl.BlockSpec((tm, out_len), lambda i: (i, 0)),
        ),
        compiler_params=pltpu.CompilerParams(
            dimension_semantics=("parallel",),
            vmem_limit_bytes=vmem_limit,
        ),
    )(x2, params["wx"], params["bx"], params["w"], params["b"])

    return out.reshape(*lead, out_len)


# ---------------------------------------------------------------------------
# Parameter construction (weight-norm fold + padding + packing, plain JAX glue)
# ---------------------------------------------------------------------------
def _weight_norm_linear(key, in_f, out_f):
    """Effective (in,out) weight + (out,) bias of a weight-normalized Linear."""
    kv, kg, kb = jax.random.split(key, 3)
    bound = 1.0 / jnp.sqrt(jnp.float32(in_f))
    v = jax.random.uniform(kv, (out_f, in_f), jnp.float32, -bound, bound)
    # Perturb g away from init so weight-norm semantics actually matter.
    g = jnp.linalg.norm(v, axis=1) * (1.0 + 0.1 * jax.random.normal(kg, (out_f,)))
    w = (g[:, None] / (jnp.linalg.norm(v, axis=1, keepdims=True) + 1e-12)) * v
    b = jax.random.uniform(kb, (out_f,), jnp.float32, -bound, bound)
    return w.T, b  # (in, out), (out,)


def make_params(key, input_len, output_len, compute_dtype=jnp.bfloat16):
    keys = jax.random.split(key, 5)
    w1a, b1a = _weight_norm_linear(keys[0], input_len, output_len)
    w1b, b1b = _weight_norm_linear(keys[1], output_len, output_len)
    ws, bs = _weight_norm_linear(keys[2], input_len, output_len)
    w2a, b2a = _weight_norm_linear(keys[3], output_len, output_len)
    w2b, b2b = _weight_norm_linear(keys[4], output_len, output_len)

    out_pad = _round_up(output_len, 128)

    def padc(a, cols):  # zero-pad columns only
        return jnp.zeros((a.shape[0], cols), jnp.float32).at[:, : a.shape[1]].set(a)

    def pad2(a, r, c):
        return jnp.zeros((r, c), jnp.float32).at[: a.shape[0], : a.shape[1]].set(a)

    # Fused x-consuming stage: [w1a | skip] -> one lane-dense matmul, K = input_len.
    wx = jnp.concatenate([padc(w1a, out_pad), padc(ws, out_pad)], axis=1)
    bx = jnp.concatenate([padc(b1a[None, :], out_pad), padc(bs[None, :], out_pad)], axis=1)

    w_stack = jnp.stack(
        [pad2(w1b, out_pad, out_pad), pad2(w2a, out_pad, out_pad), pad2(w2b, out_pad, out_pad)],
        axis=0,
    )
    b_stack = jnp.stack(
        [padc(b1b[None, :], out_pad), padc(b2a[None, :], out_pad), padc(b2b[None, :], out_pad)],
        axis=0,
    )

    return dict(
        wx=wx.astype(compute_dtype),   # (in_len, 2*out_pad) bf16
        bx=bx,                         # (1, 2*out_pad)      f32
        w=w_stack.astype(compute_dtype),  # (3, out_pad, out_pad) bf16
        b=b_stack,                        # (3, 1, out_pad)       f32
        input_len=input_len,
        output_len=output_len,
        # Unfused f32 effective weights kept for a true-math reference check.
        f32=dict(w1a=w1a, b1a=b1a, w1b=w1b, b1b=b1b, ws=ws, bs=bs,
                 w2a=w2a, b2a=b2a, w2b=w2b, b2b=b2b),
    )


# ---------------------------------------------------------------------------
# References
# ---------------------------------------------------------------------------
def mlp_reference_packed(x2, params):
    """Pure-JAX mirror of the kernel math (same packed/cast params)."""
    cdt = params["wx"].dtype
    out_pad = params["w"].shape[-1]
    out_len = params["output_len"]
    hs = jnp.dot(x2.astype(cdt), params["wx"], preferred_element_type=jnp.float32) + params["bx"]
    h = jnp.maximum(hs[:, :out_pad], 0.0)
    s = hs[:, out_pad:]
    h = jnp.dot(h.astype(cdt), params["w"][0], preferred_element_type=jnp.float32) + params["b"][0]
    z = jnp.maximum(h + s, 0.0)
    z = jnp.dot(z.astype(cdt), params["w"][1], preferred_element_type=jnp.float32) + params["b"][1]
    z = jnp.maximum(z, 0.0)
    z = jnp.dot(z.astype(cdt), params["w"][2], preferred_element_type=jnp.float32) + params["b"][2]
    return z[:, :out_len]


def mlp_reference_f32(x2, params):
    """Full-precision reference matching the PyTorch forward math."""
    p = params["f32"]
    h = jnp.maximum(x2 @ p["w1a"] + p["b1a"], 0.0)
    h = h @ p["w1b"] + p["b1b"]
    s = x2 @ p["ws"] + p["bs"]
    z = jnp.maximum(h + s, 0.0)
    z = jnp.maximum(z @ p["w2a"] + p["b2a"], 0.0)
    z = z @ p["w2b"] + p["b2b"]
    return z


if __name__ == "__main__":
    key = jax.random.PRNGKey(0)
    k_x, k_p = jax.random.split(key)

    # Small Basisformer-like shapes: (batch, channels, seq_len) -> independent
    # rows are batched into one pallas_call via the leading-dim flatten.
    batch, channels = 2, 8
    input_len = 32   # seq_len
    output_len = 64  # pred_len

    x = jax.random.normal(k_x, (batch, channels, input_len), jnp.float32)
    params = make_params(k_p, input_len, output_len)

    out = jax.block_until_ready(mlp_forward(x, params))
    assert out.shape == (batch, channels, output_len)

    x2 = x.reshape(-1, input_len)
    out2 = out.reshape(-1, output_len)

    # Tight check vs bit-for-bit mirror of the kernel math.
    ref_packed = mlp_reference_packed(x2, params)
    assert jnp.allclose(out2, ref_packed, atol=2e-3, rtol=2e-3), "mismatch vs packed reference"

    # Loose check vs full-f32 weight-norm math (bounds bf16 intermediate error).
    ref_f32 = mlp_reference_f32(x2, params)
    assert jnp.allclose(out2, ref_f32, atol=5e-2, rtol=5e-2), "mismatch vs f32 reference"

    print("KERNEL_OK")
</pallas_src>

<mosaic_0001>
module attributes {stable_mosaic.version = 11 : i64} {
  func.func @_mlp_kernel(%arg0: i32, %arg1: memref<16x32xf32, #tpu.memory_space<vmem>>, %arg2: memref<32x256xbf16, #tpu.memory_space<vmem>>, %arg3: memref<1x256xf32, #tpu.memory_space<vmem>>, %arg4: memref<3x128x128xbf16, #tpu.memory_space<vmem>>, %arg5: memref<3x1x128xf32, #tpu.memory_space<vmem>>, %arg6: memref<16x64xf32, #tpu.memory_space<vmem>>) attributes {dimension_semantics = [#tpu.dimension_semantics<parallel>], iteration_bounds = array<i64: 1>, scalar_prefetch = 0 : i64, scratch_operands = 0 : i64, tpu.core_type = #tpu.core_type<tc>, window_params = [{transform_indices = @transform_0, window_bounds = array<i64: 16, 32>}, {pipeline_mode = #tpu.pipeline_mode<synchronous>, transform_indices = @transform_1, window_bounds = array<i64: 32, 256>}, {pipeline_mode = #tpu.pipeline_mode<synchronous>, transform_indices = @transform_2, window_bounds = array<i64: 1, 256>}, {pipeline_mode = #tpu.pipeline_mode<synchronous>, transform_indices = @transform_3, window_bounds = array<i64: 3, 128, 128>}, {pipeline_mode = #tpu.pipeline_mode<synchronous>, transform_indices = @transform_4, window_bounds = array<i64: 3, 1, 128>}, {transform_indices = @transform_5, window_bounds = array<i64: 16, 64>}]} {
    %c0 = arith.constant 0 : index
    %c0_0 = arith.constant 0 : index
    %0 = vector.load %arg1[%c0, %c0_0] : memref<16x32xf32, #tpu.memory_space<vmem>>, vector<16x32xf32>
    %1 = arith.truncf %0 : vector<16x32xf32> to vector<16x32xbf16>
    %c0_1 = arith.constant 0 : index
    %c0_2 = arith.constant 0 : index
    %2 = vector.load %arg2[%c0_1, %c0_2] : memref<32x256xbf16, #tpu.memory_space<vmem>>, vector<32x256xbf16>
    %cst = arith.constant dense<0.000000e+00> : vector<16x256xf32>
    %3 = tpu.matmul %1, %2, %cst {dimension_numbers = #tpu.dot_dimension_numbers<[1], [0], [0], [1], [0, 0, 1, 1], [], []>} : vector<16x32xbf16>, vector<32x256xbf16>, vector<16x256xf32> -> vector<16x256xf32>
    %c0_3 = arith.constant 0 : index
    %c0_4 = arith.constant 0 : index
    %4 = vector.load %arg3[%c0_3, %c0_4] : memref<1x256xf32, #tpu.memory_space<vmem>>, vector<1x256xf32>
    %5 = vector.broadcast %4 : vector<1x256xf32> to vector<16x256xf32>
    %6 = arith.addf %3, %5 : vector<16x256xf32>
    %7 = vector.extract_strided_slice %6 {offsets = [0, 0], sizes = [16, 128], strides = [1, 1]} : vector<16x256xf32> to vector<16x128xf32>
    %cst_5 = arith.constant 0.000000e+00 : f32
    %8 = vector.broadcast %cst_5 : f32 to vector<16x128xf32>
    %9 = arith.maximumf %7, %8 : vector<16x128xf32>
    %10 = vector.extract_strided_slice %6 {offsets = [0, 128], sizes = [16, 128], strides = [1, 1]} : vector<16x256xf32> to vector<16x128xf32>
    %11 = arith.truncf %9 : vector<16x128xf32> to vector<16x128xbf16>
    %c0_6 = arith.constant 0 : index
    %c0_7 = arith.constant 0 : index
    %c0_8 = arith.constant 0 : index
    %12 = vector.load %arg4[%c0_6, %c0_7, %c0_8] : memref<3x128x128xbf16, #tpu.memory_space<vmem>>, vector<1x128x128xbf16>
    %13 = vector.shape_cast %12 : vector<1x128x128xbf16> to vector<128x128xbf16>
    %cst_9 = arith.constant dense<0.000000e+00> : vector<16x128xf32>
    %14 = tpu.matmul %11, %13, %cst_9 {dimension_numbers = #tpu.dot_dimension_numbers<[1], [0], [0], [1], [0, 0, 1, 1], [], []>} : vector<16x128xbf16>, vector<128x128xbf16>, vector<16x128xf32> -> vector<16x128xf32>
    %c0_10 = arith.constant 0 : index
    %c0_11 = arith.constant 0 : index
    %c0_12 = arith.constant 0 : index
    %15 = vector.load %arg5[%c0_10, %c0_11, %c0_12] : memref<3x1x128xf32, #tpu.memory_space<vmem>>, vector<1x1x128xf32>
    %16 = vector.shape_cast %15 : vector<1x1x128xf32> to vector<1x128xf32>
    %17 = vector.broadcast %16 : vector<1x128xf32> to vector<16x128xf32>
    %18 = arith.addf %14, %17 : vector<16x128xf32>
    %19 = arith.addf %18, %10 : vector<16x128xf32>
    %cst_13 = arith.constant 0.000000e+00 : f32
    %20 = vector.broadcast %cst_13 : f32 to vector<16x128xf32>
    %21 = arith.maximumf %19, %20 : vector<16x128xf32>
    %22 = arith.truncf %21 : vector<16x128xf32> to vector<16x128xbf16>
    %c1 = arith.constant 1 : index
    %c0_14 = arith.constant 0 : index
    %c0_15 = arith.constant 0 : index
    %23 = vector.load %arg4[%c1, %c0_14, %c0_15] : memref<3x128x128xbf16, #tpu.memory_space<vmem>>, vector<1x128x128xbf16>
    %24 = vector.shape_cast %23 : vector<1x128x128xbf16> to vector<128x128xbf16>
    %cst_16 = arith.constant dense<0.000000e+00> : vector<16x128xf32>
    %25 = tpu.matmul %22, %24, %cst_16 {dimension_numbers = #tpu.dot_dimension_numbers<[1], [0], [0], [1], [0, 0, 1, 1], [], []>} : vector<16x128xbf16>, vector<128x128xbf16>, vector<16x128xf32> -> vector<16x128xf32>
    %c1_17 = arith.constant 1 : index
    %c0_18 = arith.constant 0 : index
    %c0_19 = arith.constant 0 : index
    %26 = vector.load %arg5[%c1_17, %c0_18, %c0_19] : memref<3x1x128xf32, #tpu.memory_space<vmem>>, vector<1x1x128xf32>
    %27 = vector.shape_cast %26 : vector<1x1x128xf32> to vector<1x128xf32>
    %28 = vector.broadcast %27 : vector<1x128xf32> to vector<16x128xf32>
    %29 = arith.addf %25, %28 : vector<16x128xf32>
    %cst_20 = arith.constant 0.000000e+00 : f32
    %30 = vector.broadcast %cst_20 : f32 to vector<16x128xf32>
    %31 = arith.maximumf %29, %30 : vector<16x128xf32>
    %32 = arith.truncf %31 : vector<16x128xf32> to vector<16x128xbf16>
    %c2 = arith.constant 2 : index
    %c0_21 = arith.constant 0 : index
    %c0_22 = arith.constant 0 : index
    %33 = vector.load %arg4[%c2, %c0_21, %c0_22] : memref<3x128x128xbf16, #tpu.memory_space<vmem>>, vector<1x128x128xbf16>
    %34 = vector.shape_cast %33 : vector<1x128x128xbf16> to vector<128x128xbf16>
    %cst_23 = arith.constant dense<0.000000e+00> : vector<16x128xf32>
    %35 = tpu.matmul %32, %34, %cst_23 {dimension_numbers = #tpu.dot_dimension_numbers<[1], [0], [0], [1], [0, 0, 1, 1], [], []>} : vector<16x128xbf16>, vector<128x128xbf16>, vector<16x128xf32> -> vector<16x128xf32>
    %c2_24 = arith.constant 2 : index
    %c0_25 = arith.constant 0 : index
    %c0_26 = arith.constant 0 : index
    %36 = vector.load %arg5[%c2_24, %c0_25, %c0_26] : memref<3x1x128xf32, #tpu.memory_space<vmem>>, vector<1x1x128xf32>
    %37 = vector.shape_cast %36 : vector<1x1x128xf32> to vector<1x128xf32>
    %38 = vector.broadcast %37 : vector<1x128xf32> to vector<16x128xf32>
    %39 = arith.addf %35, %38 : vector<16x128xf32>
    %40 = vector.extract_strided_slice %39 {offsets = [0, 0], sizes = [16, 64], strides = [1, 1]} : vector<16x128xf32> to vector<16x64xf32>
    %c0_27 = arith.constant 0 : index
    %c0_28 = arith.constant 0 : index
    %41 = vector.load %arg6[%c0_27, %c0_28] : memref<16x64xf32, #tpu.memory_space<vmem>>, vector<16x64xf32>
    tpu.vector_store %arg6[%c0_27, %c0_28], %40 {strides = array<i32>} : memref<16x64xf32, #tpu.memory_space<vmem>>, vector<16x64xf32>,
    return
  }
  func.func @transform_0(%arg0: i32) -> (i32, i32) {
    %c0_i32 = arith.constant 0 : i32
    %c0_i32_0 = arith.constant 0 : i32
    return %arg0, %c0_i32 : i32, i32
  }
  func.func @transform_1(%arg0: i32) -> (i32, i32) {
    %c0_i32 = arith.constant 0 : i32
    %c0_i32_0 = arith.constant 0 : i32
    %c0_i32_1 = arith.constant 0 : i32
    return %c0_i32, %c0_i32_0 : i32, i32
  }
  func.func @transform_2(%arg0: i32) -> (i32, i32) {
    %c0_i32 = arith.constant 0 : i32
    %c0_i32_0 = arith.constant 0 : i32
    %c0_i32_1 = arith.constant 0 : i32
    return %c0_i32, %c0_i32_0 : i32, i32
  }
  func.func @transform_3(%arg0: i32) -> (i32, i32, i32) {
    %c0_i32 = arith.constant 0 : i32
    %c0_i32_0 = arith.constant 0 : i32
    %c0_i32_1 = arith.constant 0 : i32
    %c0_i32_2 = arith.constant 0 : i32
    return %c0_i32, %c0_i32_0, %c0_i32_1 : i32, i32, i32
  }
  func.func @transform_4(%arg0: i32) -> (i32, i32, i32) {
    %c0_i32 = arith.constant 0 : i32
    %c0_i32_0 = arith.constant 0 : i32
    %c0_i32_1 = arith.constant 0 : i32
    %c0_i32_2 = arith.constant 0 : i32
    return %c0_i32, %c0_i32_0, %c0_i32_1 : i32, i32, i32
  }
  func.func @transform_5(%arg0: i32) -> (i32, i32) {
    %c0_i32 = arith.constant 0 : i32
    %c0_i32_0 = arith.constant 0 : i32
    return %arg0, %c0_i32 : i32, i32
  }
}

</mosaic_0001>

<llo_original>
// kernel: tpu_custom_call.1
$region0: #{tpu_custom_call.1}
  #allocation0 [shape = 'u32[]', space=smem, size = 0x4, offset = 0x4, fixed_abs, tag = 'smem constant byte address 0x4 - core index']
  #allocation1 [shape = 'u32[144,128]{1,0:T(1,128)}', space=vmem, size = 0x12000, scoped, tag = 'internal scratch']
  %s0 = inlined_call_operand.hbm [shape: f32[16,32], index: 0, kind: input, shape index: {}]
  %s1 = inlined_call_operand.hbm [shape: bf16[32,256], index: 1, kind: input, shape index: {}]
  %s2 = inlined_call_operand.vmem [shape: f32[1,256], index: 2, kind: input, shape index: {}]
  %s3 = inlined_call_operand.hbm [shape: bf16[3,128,128], index: 3, kind: input, shape index: {}]
  %s4 = inlined_call_operand.vmem [shape: f32[3,1,128], index: 4, kind: input, shape index: {}]
  %s5 = inlined_call_operand.hbm [shape: f32[16,64], index: 5, kind: output, shape index: {}]
  %s6 = sld [smem:[#allocation0]]
  $region42: #{tpu_custom_call.1} parent=0
    _
  %s8 = ssub.s32 1, %s6
  %s9 = scalar_select 0, %s8, %s6
  $region1: #{tpu_custom_call.1} parent=0
    #allocation2 [shape = 'u8[8192]{0}', space=vmem, size = 0x2000, scoped, tag = 'input window, operand 0, single buffered']
    #allocation3 [shape = 's32[1]{0}', space=sflag, size = 0x4, scoped, tag = 'scoped memory for tpu_custom_call.1']
    #allocation4 [shape = 's32[1]{0}', space=sflag, size = 0x4, scoped, tag = 'scoped memory for tpu_custom_call.1']
    #allocation5 [shape = 'u8[16384]{0}', space=vmem, size = 0x4000, scoped, tag = 'input window, operand 1, single buffered']
    #allocation6 [shape = 's32[1]{0}', space=sflag, size = 0x4, scoped, tag = 'scoped memory for tpu_custom_call.1']
    #allocation7 [shape = 'u8[98304]{0}', space=vmem, size = 0x18000, scoped, tag = 'input window, operand 3, single buffered']
    #allocation8 [shape = 'u8[8192]{0}', space=vmem, size = 0x2000, scoped, tag = 'output window, operand 0, single buffered']
    %10 = vsyncpa [#allocation3], 0
    %11 = vsyncpa [#allocation6], 0
    %12 = vsyncpa [#allocation4], 0
    // Predicated region
    $region2: #{tpu_custom_call.1} parent=1 // pred_check
      _
    $region3: #{tpu_custom_call.1} parent=1 // pred_check_branch
      %14 = sbr.rel (0) target = $region5
    $region4: #{tpu_custom_call.1} parent=1 // pred_region
      %s16 = ssub.s32 256, 256
      %17 = vsyncadd [#allocation3], %s16
      %s18 = sshll.u32 [#allocation2], 4
      %s19 = int_to_ptr.vmem [resolvable:$true] %s18
      %24 = dma.hbm_to_vmem [thread:$0]  %s0, 256, %s19, [#allocation3], 128, 128, 8
    $region5: #{tpu_custom_call.1} parent=1 // pred_fallthru
      _
    // Predicated region
    $region6: #{tpu_custom_call.1} parent=1 // pred_check
      _
    $region7: #{tpu_custom_call.1} parent=1 // pred_check_branch
      %26 = sbr.rel (0) target = $region9
    $region8: #{tpu_custom_call.1} parent=1 // pred_region
      %s28 = ssub.s32 512, 512
      %29 = vsyncadd [#allocation6], %s28
      %s30 = sshll.u32 [#allocation5], 4
      %s31 = int_to_ptr.vmem [resolvable:$true] %s30
      %36 = dma.hbm_to_vmem [thread:$0]  %s1, 512, %s31, [#allocation6], 128, 128, 8
    $region9: #{tpu_custom_call.1} parent=1 // pred_fallthru
      _
    // Predicated region
    $region10: #{tpu_custom_call.1} parent=1 // pred_check
      _
    $region11: #{tpu_custom_call.1} parent=1 // pred_check_branch
      %38 = sbr.rel (0) target = $region13
    $region12: #{tpu_custom_call.1} parent=1 // pred_region
      _
    $region13: #{tpu_custom_call.1} parent=1 // pred_fallthru
      _
    // Predicated region
    $region14: #{tpu_custom_call.1} parent=1 // pred_check
      _
    $region15: #{tpu_custom_call.1} parent=1 // pred_check_branch
      %40 = sbr.rel (0) target = $region17
    $region16: #{tpu_custom_call.1} parent=1 // pred_region
      %s42 = ssub.s32 3072, 3072
      %43 = vsyncadd [#allocation6], %s42
      %s44 = sshll.u32 [#allocation7], 4
      %s45 = int_to_ptr.vmem [resolvable:$true] %s44
      %50 = dma.hbm_to_vmem [thread:$0]  %s3, 3072, %s45, [#allocation6], 64, 64, 4
    $region17: #{tpu_custom_call.1} parent=1 // pred_fallthru
      _
    // Predicated region
    $region18: #{tpu_custom_call.1} parent=1 // pred_check
      _
    $region19: #{tpu_custom_call.1} parent=1 // pred_check_branch
      %52 = sbr.rel (0) target = $region21
    $region20: #{tpu_custom_call.1} parent=1 // pred_region
      _
    $region21: #{tpu_custom_call.1} parent=1 // pred_fallthru
      _
    // Predicated region
    $region22: #{tpu_custom_call.1} parent=1 // pred_check
      _
    $region23: #{tpu_custom_call.1} parent=1 // pred_check_branch
      %54 = sbr.rel (0) target = $region25
    $region24: #{tpu_custom_call.1} parent=1 // pred_region
      %55 = dma.done [#allocation3], 256
    $region25: #{tpu_custom_call.1} parent=1 // pred_fallthru
      _
    // Predicated region
    $region26: #{tpu_custom_call.1} parent=1 // pred_check
      _
    $region27: #{tpu_custom_call.1} parent=1 // pred_check_branch
      %57 = sbr.rel (0) target = $region29
    $region28: #{tpu_custom_call.1} parent=1 // pred_region
      %58 = dma.done [#allocation6], 512
    $region29: #{tpu_custom_call.1} parent=1 // pred_fallthru
      _
    // Predicated region
    $region30: #{tpu_custom_call.1} parent=1 // pred_check
      _
    $region31: #{tpu_custom_call.1} parent=1 // pred_check_branch
      %60 = sbr.rel (0) target = $region33
    $region32: #{tpu_custom_call.1} parent=1 // pred_region
      %61 = dma.done [#allocation6], 3072
    $region33: #{tpu_custom_call.1} parent=1 // pred_fallthru
      _
    %v63 = vld [vmem:[#allocation2] sm:$0xff]
    %v64 = vld [vmem:[#allocation2 + $0x8] sm:$0xff]
    %v65 = vpack.c.bf16 %v64, %v63
    %v66 = vld [vmem:[#allocation5] sm:$0xff]
    %v67 = vld [vmem:[#allocation5 + $0x8] sm:$0xff]
    %v68 = vld [vmem:[#allocation5 + $0x10] sm:$0xff]
    %v69 = vld [vmem:[#allocation5 + $0x18] sm:$0xff]
    %v70 = vld [vmem:[%s2] sm:$0x3]
    %v72 = vlaneseq
    %v73 = vshrl.u32 %v72, 7
    %v74 = vsub.s32 0, %v73
    %v75 = vrot.slane %v70, %v74
    %v76 = vlaneseq
    %v77 = vshrl.u32 %v76, 7
    %v78 = vsub.s32 1, %v77
    %v79 = vrot.slane %v70, %v78
    %v86 = vunpack.c.l.b16 %v66
    %v87 = vunpack.c.h.b16 %v66
    %v88 = vunpack.c.l.b16 %v67
    %v89 = vunpack.c.h.b16 %v67
    %v90 = vunpack.c.l.b16 %v68
    %v91 = vunpack.c.h.b16 %v68
    %v92 = vunpack.c.l.b16 %v69
    %v93 = vunpack.c.h.b16 %v69
    %v94 = vpack.c.b16 %v88, %v86
    %v95 = vpack.c.b16 %v89, %v87
    %v96 = vpack.c.b16 %v92, %v90
    %v97 = vpack.c.b16 %v93, %v91
    %vm102 = vcmask 261120
    %v104 = vsel %vm102, %v65, 0
    %106 = vmatprep.subr.bf16.mxu0 %v95
    %107 = vmatpush1.bf16.msra.mxu0 %v94
    %108 = vmatprep.subr.bf16.mxu0 %v97
    %109 = vmatpush1.bf16.msra.mxu0 %v96
    %110 = vmatprep.subr.bf16.mxu0 0
    %111 = vmatpush1.bf16.msra.mxu0 0
    %112 = vmatprep.subr.bf16.mxu0 0
    %113 = vmatpush1.bf16.msra.mxu0 0
    %114 = vmatprep.subr.bf16.mxu0 0
    %115 = vmatpush1.bf16.msra.mxu0 0
    %116 = vmatprep.subr.bf16.mxu0 0
    %117 = vmatpush1.bf16.msra.mxu0 0
    %118 = vmatprep.subr.bf16.mxu0 0
    %119 = vmatpush1.bf16.msra.mxu0 0
    %120 = vmatprep.subr.bf16.mxu0 0
    %121 = vmatpush1.bf16.msra.mxu0 0
    %122 = vmatprep.subr.bf16.mxu0 0
    %123 = vmatpush1.bf16.msra.mxu0 0
    %124 = vmatprep.subr.bf16.mxu0 0
    %125 = vmatpush1.bf16.msra.mxu0 0
    %126 = vmatprep.subr.bf16.mxu0 0
    %127 = vmatpush1.bf16.msra.mxu0 0
    %128 = vmatprep.subr.bf16.mxu0 0
    %129 = vmatpush1.bf16.msra.mxu0 0
    %130 = vmatprep.subr.bf16.mxu0 0
    %131 = vmatpush1.bf16.msra.mxu0 0
    %132 = vmatprep.subr.bf16.mxu0 0
    %133 = vmatpush1.bf16.msra.mxu0 0
    %134 = vmatprep.subr.bf16.mxu0 0
    %135 = vmatpush1.bf16.msra.mxu0 0
    %136 = vmatprep.subr.bf16.mxu0 0
    %137 = vmatpush1.bf16.msra.mxu0 0
    %138 = vmatprep.mubr.bf16.mxu0 0
    %139 = vmatmul.mubr.bf16.gmra.mrb[0].mxu0 %v104
    %v140 = vpop.f32.mrb[0].mxu0
    %v141 = vadd.f32 %v75, %v140
    %v142 = vpop.f32.mrb[0].mxu0
    %v143 = vadd.f32 %v79, %v142
    %v144 = vpop.f32.mrb[0].mxu0
    %v145 = vadd.f32 %v75, %v144
    %v146 = vpop.f32.mrb[0].mxu0
    %v147 = vadd.f32 %v79, %v146
    %148 = vdwg.mxu0
    %v149 = vmax.f32 %v141, 0.0
    %v150 = vmax.f32 %v145, 0.0
    %v151 = vpack.c.bf16 %v150, %v149
    %v152 = vld [vmem:[#allocation7] sm:$0xf]
    %v153 = vld [vmem:[#allocation7 + $0x4] sm:$0xf]
    %v154 = vld [vmem:[#allocation7 + $0x8] sm:$0xf]
    %v155 = vld [vmem:[#allocation7 + $0xc] sm:$0xf]
    %v156 = vld [vmem:[#allocation7 + $0x10] sm:$0xf]
    %v157 = vld [vmem:[#allocation7 + $0x14] sm:$0xf]
    %v158 = vld [vmem:[#allocation7 + $0x18] sm:$0xf]
    %v159 = vld [vmem:[#allocation7 + $0x1c] sm:$0xf]
    %v160 = vld [vmem:[#allocation7 + $0x20] sm:$0xf]
    %v161 = vld [vmem:[#allocation7 + $0x24] sm:$0xf]
    %v162 = vld [vmem:[#allocation7 + $0x28] sm:$0xf]
    %v163 = vld [vmem:[#allocation7 + $0x2c] sm:$0xf]
    %v164 = vld [vmem:[#allocation7 + $0x30] sm:$0xf]
    %v165 = vld [vmem:[#allocation7 + $0x34] sm:$0xf]
    %v166 = vld [vmem:[#allocation7 + $0x38] sm:$0xf]
    %v167 = vld [vmem:[#allocation7 + $0x3c] sm:$0xf]
    %v168 = vld [vmem:[%s4] sm:$0x1]
    %v170 = vlaneseq
    %v171 = vshrl.u32 %v170, 7
    %v172 = vsub.s32 0, %v171
    %v173 = vrot.slane %v168, %v172
    %v191 = vunpack.c.l.b16 %v152
    %v192 = vunpack.c.l.b16 %v153
    %v193 = vunpack.c.l.b16 %v154
    %v194 = vunpack.c.l.b16 %v155
    %v195 = vunpack.c.l.b16 %v156
    %v196 = vunpack.c.l.b16 %v157
    %v197 = vunpack.c.l.b16 %v158
    %v198 = vunpack.c.l.b16 %v159
    %v199 = vunpack.c.l.b16 %v160
    %v200 = vunpack.c.l.b16 %v161
    %v201 = vunpack.c.l.b16 %v162
    %v202 = vunpack.c.l.b16 %v163
    %v203 = vunpack.c.l.b16 %v164
    %v204 = vunpack.c.l.b16 %v165
    %v205 = vunpack.c.l.b16 %v166
    %v206 = vunpack.c.l.b16 %v167
    %v207 = vpack.c.b16 %v192, %v191
    %v208 = vpack.c.b16 %v194, %v193
    %v209 = vpack.c.b16 %v196, %v195
    %v210 = vpack.c.b16 %v198, %v197
    %v211 = vpack.c.b16 %v200, %v199
    %v212 = vpack.c.b16 %v202, %v201
    %v213 = vpack.c.b16 %v204, %v203
    %v214 = vpack.c.b16 %v206, %v205
    %223 = vmatprep.subr.bf16.mxu0 0
    %224 = vmatpush1.bf16.msra.mxu0 %v207
    %225 = vmatprep.subr.bf16.mxu0 0
    %226 = vmatpush1.bf16.msra.mxu0 %v208
    %227 = vmatprep.subr.bf16.mxu0 0
    %228 = vmatpush1.bf16.msra.mxu0 %v209
    %229 = vmatprep.subr.bf16.mxu0 0
    %230 = vmatpush1.bf16.msra.mxu0 %v210
    %231 = vmatprep.subr.bf16.mxu0 0
    %232 = vmatpush1.bf16.msra.mxu0 %v211
    %233 = vmatprep.subr.bf16.mxu0 0
    %234 = vmatpush1.bf16.msra.mxu0 %v212
    %235 = vmatprep.subr.bf16.mxu0 0
    %236 = vmatpush1.bf16.msra.mxu0 %v213
    %237 = vmatprep.subr.bf16.mxu0 0
    %238 = vmatpush1.bf16.msra.mxu0 %v214
    %239 = vmatprep.subr.bf16.mxu0 0
    %240 = vmatpush1.bf16.msra.mxu0 0
    %241 = vmatprep.subr.bf16.mxu0 0
    %242 = vmatpush1.bf16.msra.mxu0 0
    %243 = vmatprep.subr.bf16.mxu0 0
    %244 = vmatpush1.bf16.msra.mxu0 0
    %245 = vmatprep.subr.bf16.mxu0 0
    %246 = vmatpush1.bf16.msra.mxu0 0
    %247 = vmatprep.subr.bf16.mxu0 0
    %248 = vmatpush1.bf16.msra.mxu0 0
    %249 = vmatprep.subr.bf16.mxu0 0
    %250 = vmatpush1.bf16.msra.mxu0 0
    %251 = vmatprep.subr.bf16.mxu0 0
    %252 = vmatpush1.bf16.msra.mxu0 0
    %253 = vmatprep.subr.bf16.mxu0 0
    %254 = vmatpush1.bf16.msra.mxu0 0
    %255 = vmatprep.mubr.bf16.mxu0 0
    %256 = vmatmul.mubr.bf16.gmra.mrb[0].mxu0 %v151
    %v257 = vpop.f32.mrb[0].mxu0
    %v258 = vadd.f32 %v173, %v257
    %v259 = vpop.f32.mrb[0].mxu0
    %v260 = vpop.f32.mrb[0].mxu0
    %v261 = vadd.f32 %v173, %v260
    %v262 = vpop.f32.mrb[0].mxu0
    %263 = vdwg.mxu0
    %v264 = vadd.f32 %v258, %v143
    %v265 = vadd.f32 %v261, %v147
    %v266 = vmax.f32 %v264, 0.0
    %v267 = vmax.f32 %v265, 0.0
    %v268 = vpack.c.bf16 %v267, %v266
    %s269 = scalar_lea.vmem [#allocation7], 64
    %v270 = vld [vmem:[%s269] sm:$0xf]
    %v271 = vld [vmem:[%s269 + $0x4] sm:$0xf]
    %v272 = vld [vmem:[%s269 + $0x8] sm:$0xf]
    %v273 = vld [vmem:[%s269 + $0xc] sm:$0xf]
    %v274 = vld [vmem:[%s269 + $0x10] sm:$0xf]
    %v275 = vld [vmem:[%s269 + $0x14] sm:$0xf]
    %v276 = vld [vmem:[%s269 + $0x18] sm:$0xf]
    %v277 = vld [vmem:[%s269 + $0x1c] sm:$0xf]
    %v278 = vld [vmem:[%s269 + $0x20] sm:$0xf]
    %v279 = vld [vmem:[%s269 + $0x24] sm:$0xf]
    %v280 = vld [vmem:[%s269 + $0x28] sm:$0xf]
    %v281 = vld [vmem:[%s269 + $0x2c] sm:$0xf]
    %v282 = vld [vmem:[%s269 + $0x30] sm:$0xf]
    %v283 = vld [vmem:[%s269 + $0x34] sm:$0xf]
    %v284 = vld [vmem:[%s269 + $0x38] sm:$0xf]
    %v285 = vld [vmem:[%s269 + $0x3c] sm:$0xf]
    %s286 = scalar_lea.vmem %s4, 1
    %v287 = vld [vmem:[%s286] sm:$0x1]
    %v289 = vlaneseq
    %v290 = vshrl.u32 %v289, 7
    %v291 = vsub.s32 0, %v290
    %v292 = vrot.slane %v287, %v291
    %v310 = vunpack.c.l.b16 %v270
    %v311 = vunpack.c.l.b16 %v271
    %v312 = vunpack.c.l.b16 %v272
    %v313 = vunpack.c.l.b16 %v273
    %v314 = vunpack.c.l.b16 %v274
    %v315 = vunpack.c.l.b16 %v275
    %v316 = vunpack.c.l.b16 %v276
    %v317 = vunpack.c.l.b16 %v277
    %v318 = vunpack.c.l.b16 %v278
    %v319 = vunpack.c.l.b16 %v279
    %v320 = vunpack.c.l.b16 %v280
    %v321 = vunpack.c.l.b16 %v281
    %v322 = vunpack.c.l.b16 %v282
    %v323 = vunpack.c.l.b16 %v283
    %v324 = vunpack.c.l.b16 %v284
    %v325 = vunpack.c.l.b16 %v285
    %v326 = vpack.c.b16 %v311, %v310
    %v327 = vpack.c.b16 %v313, %v312
    %v328 = vpack.c.b16 %v315, %v314
    %v329 = vpack.c.b16 %v317, %v316
    %v330 = vpack.c.b16 %v319, %v318
    %v331 = vpack.c.b16 %v321, %v320
    %v332 = vpack.c.b16 %v323, %v322
    %v333 = vpack.c.b16 %v325, %v324
    %342 = vmatprep.subr.bf16.mxu0 0
    %343 = vmatpush1.bf16.msra.mxu0 %v326
    %344 = vmatprep.subr.bf16.mxu0 0
    %345 = vmatpush1.bf16.msra.mxu0 %v327
    %346 = vmatprep.subr.bf16.mxu0 0
    %347 = vmatpush1.bf16.msra.mxu0 %v328
    %348 = vmatprep.subr.bf16.mxu0 0
    %349 = vmatpush1.bf16.msra.mxu0 %v329
    %350 = vmatprep.subr.bf16.mxu0 0
    %351 = vmatpush1.bf16.msra.mxu0 %v330
    %352 = vmatprep.subr.bf16.mxu0 0
    %353 = vmatpush1.bf16.msra.mxu0 %v331
    %354 = vmatprep.subr.bf16.mxu0 0
    %355 = vmatpush1.bf16.msra.mxu0 %v332
    %356 = vmatprep.subr.bf16.mxu0 0
    %357 = vmatpush1.bf16.msra.mxu0 %v333
    %358 = vmatprep.subr.bf16.mxu0 0
    %359 = vmatpush1.bf16.msra.mxu0 0
    %360 = vmatprep.subr.bf16.mxu0 0
    %361 = vmatpush1.bf16.msra.mxu0 0
    %362 = vmatprep.subr.bf16.mxu0 0
    %363 = vmatpush1.bf16.msra.mxu0 0
    %364 = vmatprep.subr.bf16.mxu0 0
    %365 = vmatpush1.bf16.msra.mxu0 0
    %366 = vmatprep.subr.bf16.mxu0 0
    %367 = vmatpush1.bf16.msra.mxu0 0
    %368 = vmatprep.subr.bf16.mxu0 0
    %369 = vmatpush1.bf16.msra.mxu0 0
    %370 = vmatprep.subr.bf16.mxu0 0
    %371 = vmatpush1.bf16.msra.mxu0 0
    %372 = vmatprep.subr.bf16.mxu0 0
    %373 = vmatpush1.bf16.msra.mxu0 0
    %374 = vmatprep.mubr.bf16.mxu0 0
    %375 = vmatmul.mubr.bf16.gmra.mrb[0].mxu0 %v268
    %v376 = vpop.f32.mrb[0].mxu0
    %v377 = vadd.f32 %v292, %v376
    %v378 = vpop.f32.mrb[0].mxu0
    %v379 = vpop.f32.mrb[0].mxu0
    %v380 = vadd.f32 %v292, %v379
    %v381 = vpop.f32.mrb[0].mxu0
    %382 = vdwg.mxu0
    %v383 = vmax.f32 %v377, 0.0
    %v384 = vmax.f32 %v380, 0.0
    %v385 = vpack.c.bf16 %v384, %v383
    %s386 = scalar_lea.vmem [#allocation7], 128
    %v387 = vld [vmem:[%s386] sm:$0xf]
    %v388 = vld [vmem:[%s386 + $0x4] sm:$0xf]
    %v389 = vld [vmem:[%s386 + $0x8] sm:$0xf]
    %v390 = vld [vmem:[%s386 + $0xc] sm:$0xf]
    %v391 = vld [vmem:[%s386 + $0x10] sm:$0xf]
    %v392 = vld [vmem:[%s386 + $0x14] sm:$0xf]
    %v393 = vld [vmem:[%s386 + $0x18] sm:$0xf]
    %v394 = vld [vmem:[%s386 + $0x1c] sm:$0xf]
    %v395 = vld [vmem:[%s386 + $0x20] sm:$0xf]
    %v396 = vld [vmem:[%s386 + $0x24] sm:$0xf]
    %v397 = vld [vmem:[%s386 + $0x28] sm:$0xf]
    %v398 = vld [vmem:[%s386 + $0x2c] sm:$0xf]
    %v399 = vld [vmem:[%s386 + $0x30] sm:$0xf]
    %v400 = vld [vmem:[%s386 + $0x34] sm:$0xf]
    %v401 = vld [vmem:[%s386 + $0x38] sm:$0xf]
    %v402 = vld [vmem:[%s386 + $0x3c] sm:$0xf]
    %s403 = scalar_lea.vmem %s4, 2
    %v404 = vld [vmem:[%s403] sm:$0x1]
    %v406 = vlaneseq
    %v407 = vshrl.u32 %v406, 7
    %v408 = vsub.s32 0, %v407
    %v409 = vrot.slane %v404, %v408
    %v427 = vunpack.c.l.b16 %v387
    %v428 = vunpack.c.l.b16 %v388
    %v429 = vunpack.c.l.b16 %v389
    %v430 = vunpack.c.l.b16 %v390
    %v431 = vunpack.c.l.b16 %v391
    %v432 = vunpack.c.l.b16 %v392
    %v433 = vunpack.c.l.b16 %v393
    %v434 = vunpack.c.l.b16 %v394
    %v435 = vunpack.c.l.b16 %v395
    %v436 = vunpack.c.l.b16 %v396
    %v437 = vunpack.c.l.b16 %v397
    %v438 = vunpack.c.l.b16 %v398
    %v439 = vunpack.c.l.b16 %v399
    %v440 = vunpack.c.l.b16 %v400
    %v441 = vunpack.c.l.b16 %v401
    %v442 = vunpack.c.l.b16 %v402
    %v443 = vpack.c.b16 %v428, %v427
    %v444 = vpack.c.b16 %v430, %v429
    %v445 = vpack.c.b16 %v432, %v431
    %v446 = vpack.c.b16 %v434, %v433
    %v447 = vpack.c.b16 %v436, %v435
    %v448 = vpack.c.b16 %v438, %v437
    %v449 = vpack.c.b16 %v440, %v439
    %v450 = vpack.c.b16 %v442, %v441
    %459 = vmatprep.subr.bf16.mxu0 0
    %460 = vmatpush1.bf16.msra.mxu0 %v443
    %461 = vmatprep.subr.bf16.mxu0 0
    %462 = vmatpush1.bf16.msra.mxu0 %v444
    %463 = vmatprep.subr.bf16.mxu0 0
    %464 = vmatpush1.bf16.msra.mxu0 %v445
    %465 = vmatprep.subr.bf16.mxu0 0
    %466 = vmatpush1.bf16.msra.mxu0 %v446
    %467 = vmatprep.subr.bf16.mxu0 0
    %468 = vmatpush1.bf16.msra.mxu0 %v447
    %469 = vmatprep.subr.bf16.mxu0 0
    %470 = vmatpush1.bf16.msra.mxu0 %v448
    %471 = vmatprep.subr.bf16.mxu0 0
    %472 = vmatpush1.bf16.msra.mxu0 %v449
    %473 = vmatprep.subr.bf16.mxu0 0
    %474 = vmatpush1.bf16.msra.mxu0 %v450
    %475 = vmatprep.subr.bf16.mxu0 0
    %476 = vmatpush1.bf16.msra.mxu0 0
    %477 = vmatprep.subr.bf16.mxu0 0
    %478 = vmatpush1.bf16.msra.mxu0 0
    %479 = vmatprep.subr.bf16.mxu0 0
    %480 = vmatpush1.bf16.msra.mxu0 0
    %481 = vmatprep.subr.bf16.mxu0 0
    %482 = vmatpush1.bf16.msra.mxu0 0
    %483 = vmatprep.subr.bf16.mxu0 0
    %484 = vmatpush1.bf16.msra.mxu0 0
    %485 = vmatprep.subr.bf16.mxu0 0
    %486 = vmatpush1.bf16.msra.mxu0 0
    %487 = vmatprep.subr.bf16.mxu0 0
    %488 = vmatpush1.bf16.msra.mxu0 0
    %489 = vmatprep.subr.bf16.mxu0 0
    %490 = vmatpush1.bf16.msra.mxu0 0
    %491 = vmatprep.mubr.bf16.mxu0 0
    %492 = vmatmul.mubr.bf16.gmra.mrb[0].mxu0 %v385
    %v493 = vpop.f32.mrb[0].mxu0
    %v494 = vadd.f32 %v409, %v493
    %v495 = vpop.f32.mrb[0].mxu0
    %v496 = vpop.f32.mrb[0].mxu0
    %v497 = vadd.f32 %v409, %v496
    %v498 = vpop.f32.mrb[0].mxu0
    %499 = vdwg.mxu0
    %vm500 = vcmask 523264
    %501 = vst.msk [vmem:[#allocation8] sm:$0xff] %vm500, %v494
    %502 = vst.msk [vmem:[#allocation8 + $0x8] sm:$0xff] %vm500, %v497
    // Predicated region
    $region34: #{tpu_custom_call.1} parent=1 // pred_check
      _
    $region35: #{tpu_custom_call.1} parent=1 // pred_check_branch
      %504 = sbr.rel (0) target = $region37
    $region36: #{tpu_custom_call.1} parent=1 // pred_region
      %s506 = ssub.s32 256, 256
      %507 = vsyncadd [#allocation4], %s506
      %s508 = sshll.u32 [#allocation8], 4
      %s509 = int_to_ptr.vmem [resolvable:$true] %s508
      %514 = dma.vmem_to_hbm [thread:$0]  %s509, 256, %s5, [#allocation4], 128, 128, 8
    $region37: #{tpu_custom_call.1} parent=1 // pred_fallthru
      _
    // Predicated region
    $region38: #{tpu_custom_call.1} parent=1 // pred_check
      _
    $region39: #{tpu_custom_call.1} parent=1 // pred_check_branch
      %516 = sbr.rel (0) target = $region41
    $region40: #{tpu_custom_call.1} parent=1 // pred_region
      %517 = dma.done [#allocation4], 256
    $region41: #{tpu_custom_call.1} parent=1 // pred_fallthru
      _
    %518 = vsyncpa [#allocation3], 1
    %519 = vsyncpa [#allocation6], 1
    %520 = vsyncpa [#allocation4], 1

</llo_original>
